<compile_context>
chip_gen: v5e
topology: v5e:2x2
jax: 0.10.0
libtpu: 0.0.40
codegen_flags: <defaults>
</compile_context>

<pallas_src>
import jax
import jax.numpy as jnp
from jax.experimental import pallas as pl
from jax.experimental.pallas import tpu as pltpu


def _round_up(x, m):
    return ((x + m - 1) // m) * m


def _sublane_multiple(bpe):
    # Required second-to-last-dim multiple: 4-byte -> 8, 2-byte -> 16, 1-byte -> 32.
    if bpe >= 4:
        return 8
    if bpe == 2:
        return 16
    return 32


def _device_kind():
    try:
        return jax.devices()[0].device_kind.lower()
    except Exception:
        return ""


def _vmem_physical_bytes():
    try:
        info = pltpu.get_tpu_info()
        cap = getattr(info, "vmem_capacity_bytes", None)
        if cap:
            return int(cap)
    except Exception:
        pass
    return 64 * 1024 * 1024  # conservative fallback (v7x-sized VMEM)


def _patch_embed_kernel(x_ref, w_ref, b_ref, o_ref):
    # x_ref: (TM, Kp) patch-row tile (compute dtype)
    # w_ref: (Kp, TN) flattened, zero-padded conv weight (compute dtype)
    # b_ref: (1,  TN) zero-padded conv bias (f32)
    # o_ref: (TM, TN) output tile
    acc = jnp.dot(x_ref[...], w_ref[...], preferred_element_type=jnp.float32)
    o_ref[...] = (acc + b_ref[...]).astype(o_ref.dtype)


def patch_embed_forward(x, weight, bias, patch_size, *, compute_dtype="auto"):
    """ViT patch embedding (== Conv2d(C, E, k=p, stride=p), flatten(2), transpose).

    x:      (B, C, H, W)           NCHW, like the PyTorch module
    weight: (embed_dim, C, p, p)   nn.Conv2d OIHW weight
    bias:   (embed_dim,)
    compute_dtype: "auto" (bf16 MXU operands on v6e/v7x, else x.dtype),
                   None (x.dtype), or an explicit dtype.  Accumulation and the
                   bias add are always f32.
    returns (B, num_patches, embed_dim) in x.dtype.
    """
    B, C, H, W = x.shape
    p = patch_size
    gh, gw = H // p, W // p
    num_patches = gh * gw
    embed_dim = weight.shape[0]

    out_dtype = x.dtype
    kind = _device_kind()
    if compute_dtype == "auto":
        if x.dtype == jnp.float32 and ("v6" in kind or "v7" in kind):
            cdt = jnp.dtype(jnp.bfloat16)   # native MXU path; halves DMA bytes
        else:
            cdt = jnp.dtype(x.dtype)
    elif compute_dtype is None:
        cdt = jnp.dtype(x.dtype)
    else:
        cdt = jnp.dtype(compute_dtype)

    # --- Patchify (cast FIRST so the transpose moves compute-dtype elements) --
    # (B,C,H,W) -> (B,C,gh,p,gw,p) -> (B,gh,gw,C,p,p) -> (B*P, C*p*p)
    # Per-patch feature order (C, ph, pw) matches Conv2d OIHW flattening.
    x_c = x.astype(cdt)
    w_c = weight.astype(cdt)
    patches = x_c.reshape(B, C, gh, p, gw, p)
    patches = jnp.transpose(patches, (0, 2, 4, 1, 3, 5))
    patches = patches.reshape(B * num_patches, C * p * p)

    M, K = patches.shape
    N = embed_dim

    # Lane-dense zero padding of K and N to multiples of 128 (exact: padded
    # rows/cols contribute zero).  M is NOT padded: the grid uses cdiv with a
    # partial last row tile; out-of-bounds output rows are masked on store.
    Kp = _round_up(K, 128)
    Np = _round_up(N, 128)

    patches_p = jnp.pad(patches, ((0, 0), (0, Kp - K)))
    w2d = w_c.reshape(embed_dim, K).T                                   # (K, N)
    w_p = jnp.pad(w2d, ((0, Kp - K), (0, Np - N)))
    b_p = jnp.pad(bias.reshape(1, N).astype(jnp.float32), ((0, 0), (0, Np - N)))

    bpe_in = cdt.itemsize
    bpe_out = jnp.dtype(out_dtype).itemsize
    sub = max(_sublane_multiple(bpe_in), _sublane_multiple(bpe_out))

    # --- Generation-aware VMEM budget (v5e/v6e: 128 MiB phys, v7x: 64 MiB) ---
    phys = _vmem_physical_bytes()
    vmem_limit = int(min(max(int(phys * 0.75), 32 * 1024 * 1024),
                         128 * 1024 * 1024))
    budget = vmem_limit - 2 * 1024 * 1024

    def tm_for(tn):
        # 2 buffers for the weight/bias (default pipelining) + 2 for x/out tiles.
        w_bytes = 2 * (Kp * tn * bpe_in + 8 * tn * 4)
        per_row = 2 * (Kp * bpe_in + tn * bpe_out)
        avail = budget - w_bytes
        if avail < per_row * sub:
            return 0
        return (avail // per_row // sub) * sub

    # Prefer the whole (padded) N resident; fall back to N-tiling if the weight
    # would squeeze the row tile toward the sublane floor (v7x's smaller VMEM).
    TN = Np
    TM = tm_for(TN)
    if TM < 256 and Np > 128:
        for cand in (2048, 1024, 512, 256, 128):
            if cand >= Np:
                continue
            t = tm_for(cand)
            if t >= 256 or cand == 128:
                TN, TM = cand, t
                break
    TM = max(TM, sub)
    TM = min(TM, 1024, _round_up(M, sub))

    grid_m = pl.cdiv(M, TM)
    grid_n = pl.cdiv(Np, TN)

    if "v7" in kind:
        # 2 TensorCores per chip: explicitly split the row-tile axis across cores.
        dim_sem = (pltpu.CORE_PARALLEL, pltpu.ARBITRARY)
    else:
        dim_sem = ("parallel", "arbitrary")

    cost = pl.CostEstimate(
        flops=2 * M * K * N,                        # unpadded useful flops
        transcendentals=0,
        bytes_accessed=(M * Kp * bpe_in * grid_n    # x tiles (re-read per N tile)
                        + Kp * Np * bpe_in          # weight
                        + Np * 4                    # bias
                        + M * Np * bpe_out),        # output
    )

    out = pl.pallas_call(
        _patch_embed_kernel,
        out_shape=jax.ShapeDtypeStruct((M, Np), out_dtype),
        grid_spec=pltpu.PrefetchScalarGridSpec(
            num_scalar_prefetch=0,
            grid=(grid_m, grid_n),
            in_specs=[
                pl.BlockSpec((TM, Kp), lambda i, j: (i, 0)),   # patch-row tile
                pl.BlockSpec((Kp, TN), lambda i, j: (0, j)),   # weight (resident
                                                               #  when grid_n==1)
                pl.BlockSpec((1, TN), lambda i, j: (0, j)),    # bias
            ],
            out_specs=pl.BlockSpec((TM, TN), lambda i, j: (i, j)),
        ),
        compiler_params=pltpu.CompilerParams(
            dimension_semantics=dim_sem,
            vmem_limit_bytes=vmem_limit,
            # Let XLA fuse the patchify transpose/pad/cast into the input DMA
            # pipeline when it accepts the producer (see TODO above).
            allow_input_fusion=[True, False, False],
        ),
        cost_estimate=cost,
    )(patches_p, w_p, b_p)

    if Np != N:
        out = out[:, :N]
    return out.reshape(B, num_patches, N)


if __name__ == "__main__":
    # Small shapes consistent with the module: img_size=16, patch_size=4,
    # in_chans=4, embed_dim=32  ->  num_patches = 16.
    B, C, H, W = 2, 4, 16, 16
    patch_size = 4
    embed_dim = 32

    key = jax.random.PRNGKey(0)
    kx, kw, kb = jax.random.split(key, 3)

    x = jax.random.normal(kx, (B, C, H, W), dtype=jnp.float32)
    # Deterministic parameter init (shapes match nn.Conv2d(C, embed_dim, p, stride=p)).
    fan_in = C * patch_size * patch_size
    bound = 1.0 / (fan_in ** 0.5)
    weight = jax.random.uniform(
        kw, (embed_dim, C, patch_size, patch_size),
        minval=-bound, maxval=bound, dtype=jnp.float32)
    bias = jax.random.uniform(
        kb, (embed_dim,), minval=-bound, maxval=bound, dtype=jnp.float32)

    # Plain-JAX reference (strided conv == patchify + linear projection).
    ref = jax.lax.conv_general_dilated(
        x, weight, window_strides=(patch_size, patch_size), padding="VALID",
        dimension_numbers=("NCHW", "OIHW", "NCHW"))
    ref = ref + bias.reshape(1, embed_dim, 1, 1)
    ref = ref.reshape(B, embed_dim, -1).transpose(0, 2, 1)

    num_patches = (H // patch_size) * (W // patch_size)

    # Explicit f32 compute path (tight tolerance vs reference).
    out_f32 = jax.block_until_ready(
        patch_embed_forward(x, weight, bias, patch_size,
                            compute_dtype=jnp.float32))
    assert out_f32.shape == (B, num_patches, embed_dim)
    assert jnp.allclose(out_f32, ref, atol=1e-5, rtol=1e-5)

    # Default "auto" path (bf16 MXU operands on v6e/v7x, f32 elsewhere).
    out_auto = jax.block_until_ready(
        patch_embed_forward(x, weight, bias, patch_size))
    assert out_auto.shape == (B, num_patches, embed_dim)
    assert jnp.allclose(out_auto, ref, atol=2e-2, rtol=2e-2)

    # Explicit bf16 compute path (f32 accumulation, looser tolerance).
    out_bf16 = jax.block_until_ready(
        patch_embed_forward(x, weight, bias, patch_size,
                            compute_dtype=jnp.bfloat16))
    assert jnp.allclose(out_bf16, ref, atol=2e-2, rtol=2e-2)

    print("KERNEL_OK")
</pallas_src>

<mosaic_0001>
module attributes {stable_mosaic.version = 11 : i64} {
  func.func @_patch_embed_kernel(%arg0: i32, %arg1: i32, %arg2: memref<32x128xf32, #tpu.memory_space<vmem>>, %arg3: memref<128x128xf32, #tpu.memory_space<vmem>>, %arg4: memref<1x128xf32, #tpu.memory_space<vmem>>, %arg5: memref<32x128xf32, #tpu.memory_space<vmem>>) attributes {dimension_semantics = [#tpu.dimension_semantics<parallel>, #tpu.dimension_semantics<arbitrary>], iteration_bounds = array<i64: 1, 1>, scalar_prefetch = 0 : i64, scratch_operands = 0 : i64, tpu.core_type = #tpu.core_type<tc>, window_params = [{transform_indices = @transform_0, window_bounds = array<i64: 32, 128>}, {transform_indices = @transform_1, window_bounds = array<i64: 128, 128>}, {transform_indices = @transform_2, window_bounds = array<i64: 1, 128>}, {transform_indices = @transform_3, window_bounds = array<i64: 32, 128>}]} {
    %c0 = arith.constant 0 : index
    %c0_0 = arith.constant 0 : index
    %0 = vector.load %arg2[%c0, %c0_0] : memref<32x128xf32, #tpu.memory_space<vmem>>, vector<32x128xf32>
    %c0_1 = arith.constant 0 : index
    %c0_2 = arith.constant 0 : index
    %1 = vector.load %arg3[%c0_1, %c0_2] : memref<128x128xf32, #tpu.memory_space<vmem>>, vector<128x128xf32>
    %cst = arith.constant dense<0.000000e+00> : vector<32x128xf32>
    %2 = tpu.matmul %0, %1, %cst {dimension_numbers = #tpu.dot_dimension_numbers<[1], [0], [0], [1], [0, 0, 1, 1], [], []>} : vector<32x128xf32>, vector<128x128xf32>, vector<32x128xf32> -> vector<32x128xf32>
    %c0_3 = arith.constant 0 : index
    %c0_4 = arith.constant 0 : index
    %3 = vector.load %arg4[%c0_3, %c0_4] : memref<1x128xf32, #tpu.memory_space<vmem>>, vector<1x128xf32>
    %4 = vector.broadcast %3 : vector<1x128xf32> to vector<32x128xf32>
    %5 = arith.addf %2, %4 : vector<32x128xf32>
    %c0_5 = arith.constant 0 : index
    %c0_6 = arith.constant 0 : index
    %6 = vector.load %arg5[%c0_5, %c0_6] : memref<32x128xf32, #tpu.memory_space<vmem>>, vector<32x128xf32>
    tpu.vector_store %arg5[%c0_5, %c0_6], %5 {strides = array<i32>} : memref<32x128xf32, #tpu.memory_space<vmem>>, vector<32x128xf32>,
    return
  }
  func.func @transform_0(%arg0: i32, %arg1: i32) -> (i32, i32) {
    %c0_i32 = arith.constant 0 : i32
    %c0_i32_0 = arith.constant 0 : i32
    return %arg0, %c0_i32 : i32, i32
  }
  func.func @transform_1(%arg0: i32, %arg1: i32) -> (i32, i32) {
    %c0_i32 = arith.constant 0 : i32
    %c0_i32_0 = arith.constant 0 : i32
    return %c0_i32, %arg1 : i32, i32
  }
  func.func @transform_2(%arg0: i32, %arg1: i32) -> (i32, i32) {
    %c0_i32 = arith.constant 0 : i32
    %c0_i32_0 = arith.constant 0 : i32
    return %c0_i32, %arg1 : i32, i32
  }
  func.func @transform_3(%arg0: i32, %arg1: i32) -> (i32, i32) {
    %c0_i32 = arith.constant 0 : i32
    return %arg0, %arg1 : i32, i32
  }
}

</mosaic_0001>

<llo_original>
// kernel: tpu_custom_call.1
$region0: #{tpu_custom_call.1}
  #allocation0 [shape = 'u32[]', space=smem, size = 0x4, offset = 0x4, fixed_abs, tag = 'smem constant byte address 0x4 - core index']
  #allocation1 [shape = 'u32[72,128]{1,0:T(1,128)}', space=vmem, size = 0x9000, scoped, tag = 'internal scratch']
  %s0 = inlined_call_operand.hbm [shape: f32[32,128], index: 0, kind: input, shape index: {}]
  %s1 = inlined_call_operand.hbm [shape: f32[128,128], index: 1, kind: input, shape index: {}]
  %s2 = inlined_call_operand.vmem [shape: f32[1,128], index: 2, kind: input, shape index: {}]
  %s3 = inlined_call_operand.hbm [shape: f32[32,128], index: 3, kind: output, shape index: {}]
  %s4 = sld [smem:[#allocation0]]
  $region30: #{tpu_custom_call.1} parent=0
    _
  %s6 = ssub.s32 1, %s4
  %s7 = scalar_select 0, %s6, %s4
  $region1: #{tpu_custom_call.1} parent=0
    #allocation2 [shape = 'u8[16384]{0}', space=vmem, size = 0x4000, scoped, tag = 'input window, operand 0, single buffered']
    #allocation3 [shape = 's32[1]{0}', space=sflag, size = 0x4, scoped, tag = 'scoped memory for tpu_custom_call.1']
    #allocation4 [shape = 's32[1]{0}', space=sflag, size = 0x4, scoped, tag = 'scoped memory for tpu_custom_call.1']
    #allocation5 [shape = 'u8[65536]{0}', space=vmem, size = 0x10000, scoped, tag = 'input window, operand 1, single buffered']
    #allocation6 [shape = 's32[1]{0}', space=sflag, size = 0x4, scoped, tag = 'scoped memory for tpu_custom_call.1']
    #allocation7 [shape = 'u8[16384]{0}', space=vmem, size = 0x4000, scoped, tag = 'output window, operand 0, single buffered']
    %8 = vsyncpa [#allocation3], 0
    %9 = vsyncpa [#allocation6], 0
    %10 = vsyncpa [#allocation4], 0
    // Predicated region
    $region2: #{tpu_custom_call.1} parent=1 // pred_check
      _
    $region3: #{tpu_custom_call.1} parent=1 // pred_check_branch
      %12 = sbr.rel (0) target = $region5
    $region4: #{tpu_custom_call.1} parent=1 // pred_region
      %14 = vsyncadd [#allocation3], 0
      %s15 = sshll.u32 %s0, 4
      %s16 = int_to_ptr.hbm [resolvable:$true] %s15
      %s17 = sshll.u32 [#allocation2], 4
      %s18 = int_to_ptr.vmem [resolvable:$true] %s17
      %23 = dma.hbm_to_vmem [thread:$0]  %s16, 512, %s18, [#allocation3], 128, 128, 8
    $region5: #{tpu_custom_call.1} parent=1 // pred_fallthru
      _
    // Predicated region
    $region6: #{tpu_custom_call.1} parent=1 // pred_check
      _
    $region7: #{tpu_custom_call.1} parent=1 // pred_check_branch
      %25 = sbr.rel (0) target = $region9
    $region8: #{tpu_custom_call.1} parent=1 // pred_region
      %27 = vsyncadd [#allocation6], 0
      %s28 = sshll.u32 %s1, 4
      %s29 = int_to_ptr.hbm [resolvable:$true] %s28
      %s30 = sshll.u32 [#allocation5], 4
      %s31 = int_to_ptr.vmem [resolvable:$true] %s30
      %36 = dma.hbm_to_vmem [thread:$0]  %s29, 2048, %s31, [#allocation6], 128, 128, 8
    $region9: #{tpu_custom_call.1} parent=1 // pred_fallthru
      _
    // Predicated region
    $region10: #{tpu_custom_call.1} parent=1 // pred_check
      _
    $region11: #{tpu_custom_call.1} parent=1 // pred_check_branch
      %38 = sbr.rel (0) target = $region13
    $region12: #{tpu_custom_call.1} parent=1 // pred_region
      _
    $region13: #{tpu_custom_call.1} parent=1 // pred_fallthru
      _
    // Predicated region
    $region14: #{tpu_custom_call.1} parent=1 // pred_check
      _
    $region15: #{tpu_custom_call.1} parent=1 // pred_check_branch
      %40 = sbr.rel (0) target = $region17
    $region16: #{tpu_custom_call.1} parent=1 // pred_region
      %42 = dma.done [#allocation3], 512
    $region17: #{tpu_custom_call.1} parent=1 // pred_fallthru
      _
    // Predicated region
    $region18: #{tpu_custom_call.1} parent=1 // pred_check
      _
    $region19: #{tpu_custom_call.1} parent=1 // pred_check_branch
      %44 = sbr.rel (0) target = $region21
    $region20: #{tpu_custom_call.1} parent=1 // pred_region
      %46 = dma.done [#allocation6], 2048
    $region21: #{tpu_custom_call.1} parent=1 // pred_fallthru
      _
    %v47 = vld [vmem:[#allocation2] sm:$0xff]
    %v48 = vld [vmem:[#allocation2 + $0x8] sm:$0xff]
    %v49 = vld [vmem:[#allocation2 + $0x10] sm:$0xff]
    %v50 = vld [vmem:[#allocation2 + $0x18] sm:$0xff]
    %v51 = vld [vmem:[#allocation5] sm:$0xff]
    %v52 = vld [vmem:[#allocation5 + $0x8] sm:$0xff]
    %v53 = vld [vmem:[#allocation5 + $0x10] sm:$0xff]
    %v54 = vld [vmem:[#allocation5 + $0x18] sm:$0xff]
    %v55 = vld [vmem:[#allocation5 + $0x20] sm:$0xff]
    %v56 = vld [vmem:[#allocation5 + $0x28] sm:$0xff]
    %v57 = vld [vmem:[#allocation5 + $0x30] sm:$0xff]
    %v58 = vld [vmem:[#allocation5 + $0x38] sm:$0xff]
    %v59 = vld [vmem:[#allocation5 + $0x40] sm:$0xff]
    %v60 = vld [vmem:[#allocation5 + $0x48] sm:$0xff]
    %v61 = vld [vmem:[#allocation5 + $0x50] sm:$0xff]
    %v62 = vld [vmem:[#allocation5 + $0x58] sm:$0xff]
    %v63 = vld [vmem:[#allocation5 + $0x60] sm:$0xff]
    %v64 = vld [vmem:[#allocation5 + $0x68] sm:$0xff]
    %v65 = vld [vmem:[#allocation5 + $0x70] sm:$0xff]
    %v66 = vld [vmem:[#allocation5 + $0x78] sm:$0xff]
    %v67 = vld [vmem:[%s2] sm:$0x1]
    %v69 = vperm.slane %v67, 0
    %71 = vmatpush.msra.mxu0 %v66
    %72 = vmatpush.msra.mxu0 %v65
    %73 = vmatpush.msra.mxu0 %v64
    %74 = vmatpush.msra.mxu0 %v63
    %75 = vmatpush.msra.mxu0 %v62
    %76 = vmatpush.msra.mxu0 %v61
    %77 = vmatpush.msra.mxu0 %v60
    %78 = vmatpush.msra.mxu0 %v59
    %79 = vmatpush.msra.mxu0 %v58
    %80 = vmatpush.msra.mxu0 %v57
    %81 = vmatpush.msra.mxu0 %v56
    %82 = vmatpush.msra.mxu0 %v55
    %83 = vmatpush.msra.mxu0 %v54
    %84 = vmatpush.msra.mxu0 %v53
    %85 = vmatpush.msra.mxu0 %v52
    %86 = vmatpush.msra.mxu0 %v51
    %87 = vmatmul.f32.gmra.mxu0 %v47
    %v88 = vpop.f32.mrf.mxu0
    %v89 = vadd.f32 %v69, %v88
    %90 = vmatmul.f32.gmra.mxu0 %v48
    %v91 = vpop.f32.mrf.mxu0
    %v92 = vadd.f32 %v69, %v91
    %93 = vmatmul.f32.gmra.mxu0 %v49
    %v94 = vpop.f32.mrf.mxu0
    %v95 = vadd.f32 %v69, %v94
    %96 = vmatmul.f32.gmra.mxu0 %v50
    %v97 = vpop.f32.mrf.mxu0
    %v98 = vadd.f32 %v69, %v97
    %99 = vdwg.mxu0
    %100 = vst [vmem:[#allocation7] sm:$0xff] %v89
    %101 = vst [vmem:[#allocation7 + $0x8] sm:$0xff] %v92
    %102 = vst [vmem:[#allocation7 + $0x10] sm:$0xff] %v95
    %103 = vst [vmem:[#allocation7 + $0x18] sm:$0xff] %v98
    // Predicated region
    $region22: #{tpu_custom_call.1} parent=1 // pred_check
      _
    $region23: #{tpu_custom_call.1} parent=1 // pred_check_branch
      %105 = sbr.rel (0) target = $region25
    $region24: #{tpu_custom_call.1} parent=1 // pred_region
      %107 = vsyncadd [#allocation4], 0
      %s108 = sshll.u32 [#allocation7], 4
      %s109 = int_to_ptr.vmem [resolvable:$true] %s108
      %s110 = sshll.u32 %s3, 4
      %s111 = int_to_ptr.hbm [resolvable:$true] %s110
      %116 = dma.vmem_to_hbm [thread:$0]  %s109, 512, %s111, [#allocation4], 128, 128, 8
    $region25: #{tpu_custom_call.1} parent=1 // pred_fallthru
      _
    // Predicated region
    $region26: #{tpu_custom_call.1} parent=1 // pred_check
      _
    $region27: #{tpu_custom_call.1} parent=1 // pred_check_branch
      %118 = sbr.rel (0) target = $region29
    $region28: #{tpu_custom_call.1} parent=1 // pred_region
      %120 = dma.done [#allocation4], 512
    $region29: #{tpu_custom_call.1} parent=1 // pred_fallthru
      _
    %121 = vsyncpa [#allocation3], 1
    %122 = vsyncpa [#allocation6], 1
    %123 = vsyncpa [#allocation4], 1

</llo_original>
